<compile_context>
chip_gen: v7x
topology: tpu7x:2x2x1
jax: 0.10.0
libtpu: 0.0.40
codegen_flags: <defaults>
</compile_context>

<pallas_src>
import functools

import jax
import jax.numpy as jnp
from jax.experimental import pallas as pl
from jax.experimental.pallas import tpu as pltpu


def _round_up(n, m):
    return ((n + m - 1) // m) * m


def _center_loss_kernel(labels_ref, x_ref, centers_ref, out_ref, cbuf, acc,
                        *, batch, add_const, inv_batch):
    i = pl.program_id(0)
    nsteps = pl.num_programs(0)
    tb = x_ref.shape[0]

    @pl.when(i == 0)
    def _():
        acc[...] = jnp.zeros_like(acc)

    # In-VMEM gather: centers is fully VMEM-resident (constant index_map), so pull
    # the tb labelled rows with dynamic-sublane row copies driven by SMEM labels.
    for r in range(tb):
        lbl = labels_ref[i * tb + r]
        cbuf[pl.ds(r, 1), :] = centers_ref[pl.ds(lbl, 1), :]

    # ||x_b - c_{y_b}||^2 per row, clamped like the PyTorch module.
    diff = x_ref[...] - cbuf[...]                             # (tb, D) f32, VPU
    row_d2 = jnp.sum(diff * diff, axis=1, keepdims=True)      # (tb, 1)
    row_loss = jnp.clip(row_d2, 1e-12, 1.0e12)

    # Mask padded tail rows (global row index >= true batch size).
    row_ids = i * tb + jax.lax.broadcasted_iota(jnp.int32, (tb, 1), 0)
    tile_sum = jnp.sum(jnp.where(row_ids < batch, row_loss, 0.0))
    acc[...] += tile_sum

    # Final step: fold in the analytic masked-out constant and normalize by B.
    @pl.when(i == nsteps - 1)
    def _():
        out_ref[...] = (acc[...] + add_const) * inv_batch


def center_loss(x, centers, labels, *, batch_tile=256,
                vmem_budget_bytes=24 * 1024 * 1024):
    """x: (B, D) f32, centers: (C, D) f32, labels: (B,) int -> scalar f32."""
    x = x.reshape(x.shape[0], -1).astype(jnp.float32)
    centers = centers.astype(jnp.float32)
    B, D = x.shape
    C, Dc = centers.shape
    assert Dc == D, "feature dims of x and centers must match"

    itemsize = 4
    centers_bytes = 2 * C * D * itemsize          # resident table (double-buffer bound)
    # TODO(synk): HBM-gather fallback when the centers table exceeds the budget.
    assert centers_bytes < vmem_budget_bytes, "centers table too large for VMEM path"

    # Largest batch tile (multiple of 8) that fits: x double-buffer + cbuf scratch.
    per_row_bytes = 3 * D * itemsize
    max_tile = (vmem_budget_bytes - centers_bytes) // per_row_bytes
    bt = min(batch_tile, _round_up(B, 8), max_tile)
    bt = max(8, (bt // 8) * 8)

    nsteps = pl.cdiv(B, bt)
    b_pad = nsteps * bt
    if b_pad != B:
        x = jnp.pad(x, ((0, b_pad - B), (0, 0)))
        labels = jnp.pad(labels, (0, b_pad - B))
    labels = labels.astype(jnp.int32)

    kernel = functools.partial(
        _center_loss_kernel,
        batch=B,
        add_const=float(B) * float(C - 1) * 1e-12,   # masked-out entries after clamp
        inv_batch=1.0 / float(B))

    out = pl.pallas_call(
        kernel,
        out_shape=jax.ShapeDtypeStruct((1, 1), jnp.float32),
        grid_spec=pltpu.PrefetchScalarGridSpec(
            num_scalar_prefetch=1,                           # labels -> SMEM
            grid=(nsteps,),
            in_specs=[
                # x streamed one (bt, D) block per grid step.
                pl.BlockSpec((bt, D), lambda i, lbl: (i, 0)),
                # centers: full table, constant index -> DMA'd once, VMEM-resident.
                pl.BlockSpec((C, D), lambda i, lbl: (0, 0)),
            ],
            out_specs=pl.BlockSpec((1, 1), lambda i, lbl: (0, 0)),
            scratch_shapes=[
                pltpu.VMEM((bt, D), jnp.float32),            # gathered center rows
                pltpu.VMEM((1, 1), jnp.float32),             # loss accumulator
            ],
        ),
        compiler_params=pltpu.CompilerParams(
            dimension_semantics=("arbitrary",),              # scalar-accumulation axis
            vmem_limit_bytes=32 * 1024 * 1024,
        ),
    )(labels, x, centers)
    return out[0, 0]


def center_loss_ref(x, centers, labels):
    """Dense reference matching the PyTorch module exactly."""
    B = x.shape[0]
    C = centers.shape[0]
    x = x.reshape(B, -1)
    x_sq = jnp.sum(x ** 2, axis=1, keepdims=True)
    c_sq = jnp.sum(centers ** 2, axis=1, keepdims=True)
    distmat = x_sq + c_sq.T - 2.0 * (x @ centers.T)
    mask = labels[:, None] == jnp.arange(C)[None, :]
    dist = distmat * mask.astype(jnp.float32)
    return jnp.sum(jnp.clip(dist, 1e-12, 1.0e12)) / B


if __name__ == "__main__":
    # Case 1: small shapes consistent with the module (batch=32, feat_dim=128,
    # num_classes=64) — single grid step, full-tile path.
    B, D, C = 32, 128, 64
    kx, kc, kl = jax.random.split(jax.random.PRNGKey(0), 3)
    x = jax.random.normal(kx, (B, D), dtype=jnp.float32)
    centers = jax.random.normal(kc, (C, D), dtype=jnp.float32)   # ~ torch.randn(C, D)
    labels = jax.random.randint(kl, (B,), 0, C, dtype=jnp.int32)

    loss = jax.block_until_ready(center_loss(x, centers, labels))
    ref = jax.block_until_ready(center_loss_ref(x, centers, labels))
    assert jnp.allclose(loss, ref, rtol=1e-5, atol=1e-5), (loss, ref)

    # Case 2: ragged batch + multi-step accumulation (B not a multiple of the
    # tile) to exercise the resident accumulator and the tail mask.
    B2, D2, C2 = 272, 128, 64
    kx2, kc2, kl2 = jax.random.split(jax.random.PRNGKey(1), 3)
    x2 = jax.random.normal(kx2, (B2, D2), dtype=jnp.float32)
    centers2 = jax.random.normal(kc2, (C2, D2), dtype=jnp.float32)
    labels2 = jax.random.randint(kl2, (B2,), 0, C2, dtype=jnp.int32)

    loss2 = jax.block_until_ready(center_loss(x2, centers2, labels2, batch_tile=128))
    ref2 = jax.block_until_ready(center_loss_ref(x2, centers2, labels2))
    assert jnp.allclose(loss2, ref2, rtol=1e-5, atol=1e-5), (loss2, ref2)

    print("KERNEL_OK")
</pallas_src>

<mosaic_0001>
module attributes {stable_mosaic.version = 11 : i64} {
  func.func @_center_loss_kernel(%arg0: i32, %arg1: memref<32xi32, #tpu.memory_space<smem>>, %arg2: memref<32x128xf32, #tpu.memory_space<vmem>>, %arg3: memref<64x128xf32, #tpu.memory_space<vmem>>, %arg4: memref<1x1xf32, #tpu.memory_space<vmem>>, %arg5: memref<32x128xf32, #tpu.memory_space<vmem>>, %arg6: memref<1x1xf32, #tpu.memory_space<vmem>>) attributes {dimension_semantics = [#tpu.dimension_semantics<arbitrary>], iteration_bounds = array<i64: 1>, scalar_prefetch = 1 : i64, scratch_operands = 2 : i64, tpu.core_type = #tpu.core_type<tc>, window_params = [{transform_indices = @transform_0, window_bounds = array<i64: 32, 128>}, {pipeline_mode = #tpu.pipeline_mode<synchronous>, transform_indices = @transform_1, window_bounds = array<i64: 64, 128>}, {pipeline_mode = #tpu.pipeline_mode<synchronous>, transform_indices = @transform_2, window_bounds = array<i64: 1, 1>}]} {
    %c0_i32 = arith.constant 0 : i32
    %0 = arith.cmpi eq, %arg0, %c0_i32 : i32
    %1 = arith.extui %0 : i1 to i32
    %c0_i32_0 = arith.constant 0 : i32
    %2 = arith.cmpi ne, %1, %c0_i32_0 : i32
    scf.if %2 {
      %cst_113 = arith.constant 0.000000e+00 : f32
      %256 = vector.broadcast %cst_113 : f32 to vector<1x1xf32>
      %c0_114 = arith.constant 0 : index
      %c0_115 = arith.constant 0 : index
      %257 = vector.load %arg6[%c0_114, %c0_115] : memref<1x1xf32, #tpu.memory_space<vmem>>, vector<1x1xf32>
      tpu.vector_store %arg6[%c0_114, %c0_115], %256 {strides = array<i32>} : memref<1x1xf32, #tpu.memory_space<vmem>>, vector<1x1xf32>,
    } else {
    }
    %c32_i32 = arith.constant 32 : i32
    %3 = arith.muli %arg0, %c32_i32 : i32
    %c0_i32_1 = arith.constant 0 : i32
    %4 = arith.addi %3, %c0_i32_1 : i32
    %5 = arith.index_cast %4 : i32 to index
    %6 = memref.load %arg1[%5] : memref<32xi32, #tpu.memory_space<smem>>
    %7 = arith.index_cast %6 : i32 to index
    %c0 = arith.constant 0 : index
    %8 = vector.load %arg3[%7, %c0] : memref<64x128xf32, #tpu.memory_space<vmem>>, vector<1x128xf32>
    %c0_2 = arith.constant 0 : index
    %c0_3 = arith.constant 0 : index
    %9 = vector.load %arg5[%c0_2, %c0_3] : memref<32x128xf32, #tpu.memory_space<vmem>>, vector<1x128xf32>
    tpu.vector_store %arg5[%c0_2, %c0_3], %8 {strides = array<i32>} : memref<32x128xf32, #tpu.memory_space<vmem>>, vector<1x128xf32>,
    %c32_i32_4 = arith.constant 32 : i32
    %10 = arith.muli %arg0, %c32_i32_4 : i32
    %c1_i32 = arith.constant 1 : i32
    %11 = arith.addi %10, %c1_i32 : i32
    %12 = arith.index_cast %11 : i32 to index
    %13 = memref.load %arg1[%12] : memref<32xi32, #tpu.memory_space<smem>>
    %14 = arith.index_cast %13 : i32 to index
    %c0_5 = arith.constant 0 : index
    %15 = vector.load %arg3[%14, %c0_5] : memref<64x128xf32, #tpu.memory_space<vmem>>, vector<1x128xf32>
    %c1 = arith.constant 1 : index
    %c0_6 = arith.constant 0 : index
    %16 = vector.load %arg5[%c1, %c0_6] : memref<32x128xf32, #tpu.memory_space<vmem>>, vector<1x128xf32>
    tpu.vector_store %arg5[%c1, %c0_6], %15 {strides = array<i32>} : memref<32x128xf32, #tpu.memory_space<vmem>>, vector<1x128xf32>,
    %c32_i32_7 = arith.constant 32 : i32
    %17 = arith.muli %arg0, %c32_i32_7 : i32
    %c2_i32 = arith.constant 2 : i32
    %18 = arith.addi %17, %c2_i32 : i32
    %19 = arith.index_cast %18 : i32 to index
    %20 = memref.load %arg1[%19] : memref<32xi32, #tpu.memory_space<smem>>
    %21 = arith.index_cast %20 : i32 to index
    %c0_8 = arith.constant 0 : index
    %22 = vector.load %arg3[%21, %c0_8] : memref<64x128xf32, #tpu.memory_space<vmem>>, vector<1x128xf32>
    %c2 = arith.constant 2 : index
    %c0_9 = arith.constant 0 : index
    %23 = vector.load %arg5[%c2, %c0_9] : memref<32x128xf32, #tpu.memory_space<vmem>>, vector<1x128xf32>
    tpu.vector_store %arg5[%c2, %c0_9], %22 {strides = array<i32>} : memref<32x128xf32, #tpu.memory_space<vmem>>, vector<1x128xf32>,
    %c32_i32_10 = arith.constant 32 : i32
    %24 = arith.muli %arg0, %c32_i32_10 : i32
    %c3_i32 = arith.constant 3 : i32
    %25 = arith.addi %24, %c3_i32 : i32
    %26 = arith.index_cast %25 : i32 to index
    %27 = memref.load %arg1[%26] : memref<32xi32, #tpu.memory_space<smem>>
    %28 = arith.index_cast %27 : i32 to index
    %c0_11 = arith.constant 0 : index
    %29 = vector.load %arg3[%28, %c0_11] : memref<64x128xf32, #tpu.memory_space<vmem>>, vector<1x128xf32>
    %c3 = arith.constant 3 : index
    %c0_12 = arith.constant 0 : index
    %30 = vector.load %arg5[%c3, %c0_12] : memref<32x128xf32, #tpu.memory_space<vmem>>, vector<1x128xf32>
    tpu.vector_store %arg5[%c3, %c0_12], %29 {strides = array<i32>} : memref<32x128xf32, #tpu.memory_space<vmem>>, vector<1x128xf32>,
    %c32_i32_13 = arith.constant 32 : i32
    %31 = arith.muli %arg0, %c32_i32_13 : i32
    %c4_i32 = arith.constant 4 : i32
    %32 = arith.addi %31, %c4_i32 : i32
    %33 = arith.index_cast %32 : i32 to index
    %34 = memref.load %arg1[%33] : memref<32xi32, #tpu.memory_space<smem>>
    %35 = arith.index_cast %34 : i32 to index
    %c0_14 = arith.constant 0 : index
    %36 = vector.load %arg3[%35, %c0_14] : memref<64x128xf32, #tpu.memory_space<vmem>>, vector<1x128xf32>
    %c4 = arith.constant 4 : index
    %c0_15 = arith.constant 0 : index
    %37 = vector.load %arg5[%c4, %c0_15] : memref<32x128xf32, #tpu.memory_space<vmem>>, vector<1x128xf32>
    tpu.vector_store %arg5[%c4, %c0_15], %36 {strides = array<i32>} : memref<32x128xf32, #tpu.memory_space<vmem>>, vector<1x128xf32>,
    %c32_i32_16 = arith.constant 32 : i32
    %38 = arith.muli %arg0, %c32_i32_16 : i32
    %c5_i32 = arith.constant 5 : i32
    %39 = arith.addi %38, %c5_i32 : i32
    %40 = arith.index_cast %39 : i32 to index
    %41 = memref.load %arg1[%40] : memref<32xi32, #tpu.memory_space<smem>>
    %42 = arith.index_cast %41 : i32 to index
    %c0_17 = arith.constant 0 : index
    %43 = vector.load %arg3[%42, %c0_17] : memref<64x128xf32, #tpu.memory_space<vmem>>, vector<1x128xf32>
    %c5 = arith.constant 5 : index
    %c0_18 = arith.constant 0 : index
    %44 = vector.load %arg5[%c5, %c0_18] : memref<32x128xf32, #tpu.memory_space<vmem>>, vector<1x128xf32>
    tpu.vector_store %arg5[%c5, %c0_18], %43 {strides = array<i32>} : memref<32x128xf32, #tpu.memory_space<vmem>>, vector<1x128xf32>,
    %c32_i32_19 = arith.constant 32 : i32
    %45 = arith.muli %arg0, %c32_i32_19 : i32
    %c6_i32 = arith.constant 6 : i32
    %46 = arith.addi %45, %c6_i32 : i32
    %47 = arith.index_cast %46 : i32 to index
    %48 = memref.load %arg1[%47] : memref<32xi32, #tpu.memory_space<smem>>
    %49 = arith.index_cast %48 : i32 to index
    %c0_20 = arith.constant 0 : index
    %50 = vector.load %arg3[%49, %c0_20] : memref<64x128xf32, #tpu.memory_space<vmem>>, vector<1x128xf32>
    %c6 = arith.constant 6 : index
    %c0_21 = arith.constant 0 : index
    %51 = vector.load %arg5[%c6, %c0_21] : memref<32x128xf32, #tpu.memory_space<vmem>>, vector<1x128xf32>
    tpu.vector_store %arg5[%c6, %c0_21], %50 {strides = array<i32>} : memref<32x128xf32, #tpu.memory_space<vmem>>, vector<1x128xf32>,
    %c32_i32_22 = arith.constant 32 : i32
    %52 = arith.muli %arg0, %c32_i32_22 : i32
    %c7_i32 = arith.constant 7 : i32
    %53 = arith.addi %52, %c7_i32 : i32
    %54 = arith.index_cast %53 : i32 to index
    %55 = memref.load %arg1[%54] : memref<32xi32, #tpu.memory_space<smem>>
    %56 = arith.index_cast %55 : i32 to index
    %c0_23 = arith.constant 0 : index
    %57 = vector.load %arg3[%56, %c0_23] : memref<64x128xf32, #tpu.memory_space<vmem>>, vector<1x128xf32>
    %c7 = arith.constant 7 : index
    %c0_24 = arith.constant 0 : index
    %58 = vector.load %arg5[%c7, %c0_24] : memref<32x128xf32, #tpu.memory_space<vmem>>, vector<1x128xf32>
    tpu.vector_store %arg5[%c7, %c0_24], %57 {strides = array<i32>} : memref<32x128xf32, #tpu.memory_space<vmem>>, vector<1x128xf32>,
    %c32_i32_25 = arith.constant 32 : i32
    %59 = arith.muli %arg0, %c32_i32_25 : i32
    %c8_i32 = arith.constant 8 : i32
    %60 = arith.addi %59, %c8_i32 : i32
    %61 = arith.index_cast %60 : i32 to index
    %62 = memref.load %arg1[%61] : memref<32xi32, #tpu.memory_space<smem>>
    %63 = arith.index_cast %62 : i32 to index
    %c0_26 = arith.constant 0 : index
    %64 = vector.load %arg3[%63, %c0_26] : memref<64x128xf32, #tpu.memory_space<vmem>>, vector<1x128xf32>
    %c8 = arith.constant 8 : index
    %c0_27 = arith.constant 0 : index
    %65 = vector.load %arg5[%c8, %c0_27] : memref<32x128xf32, #tpu.memory_space<vmem>>, vector<1x128xf32>
    tpu.vector_store %arg5[%c8, %c0_27], %64 {strides = array<i32>} : memref<32x128xf32, #tpu.memory_space<vmem>>, vector<1x128xf32>,
    %c32_i32_28 = arith.constant 32 : i32
    %66 = arith.muli %arg0, %c32_i32_28 : i32
    %c9_i32 = arith.constant 9 : i32
    %67 = arith.addi %66, %c9_i32 : i32
    %68 = arith.index_cast %67 : i32 to index
    %69 = memref.load %arg1[%68] : memref<32xi32, #tpu.memory_space<smem>>
    %70 = arith.index_cast %69 : i32 to index
    %c0_29 = arith.constant 0 : index
    %71 = vector.load %arg3[%70, %c0_29] : memref<64x128xf32, #tpu.memory_space<vmem>>, vector<1x128xf32>
    %c9 = arith.constant 9 : index
    %c0_30 = arith.constant 0 : index
    %72 = vector.load %arg5[%c9, %c0_30] : memref<32x128xf32, #tpu.memory_space<vmem>>, vector<1x128xf32>
    tpu.vector_store %arg5[%c9, %c0_30], %71 {strides = array<i32>} : memref<32x128xf32, #tpu.memory_space<vmem>>, vector<1x128xf32>,
    %c32_i32_31 = arith.constant 32 : i32
    %73 = arith.muli %arg0, %c32_i32_31 : i32
    %c10_i32 = arith.constant 10 : i32
    %74 = arith.addi %73, %c10_i32 : i32
    %75 = arith.index_cast %74 : i32 to index
    %76 = memref.load %arg1[%75] : memref<32xi32, #tpu.memory_space<smem>>
    %77 = arith.index_cast %76 : i32 to index
    %c0_32 = arith.constant 0 : index
    %78 = vector.load %arg3[%77, %c0_32] : memref<64x128xf32, #tpu.memory_space<vmem>>, vector<1x128xf32>
    %c10 = arith.constant 10 : index
    %c0_33 = arith.constant 0 : index
    %79 = vector.load %arg5[%c10, %c0_33] : memref<32x128xf32, #tpu.memory_space<vmem>>, vector<1x128xf32>
    tpu.vector_store %arg5[%c10, %c0_33], %78 {strides = array<i32>} : memref<32x128xf32, #tpu.memory_space<vmem>>, vector<1x128xf32>,
    %c32_i32_34 = arith.constant 32 : i32
    %80 = arith.muli %arg0, %c32_i32_34 : i32
    %c11_i32 = arith.constant 11 : i32
    %81 = arith.addi %80, %c11_i32 : i32
    %82 = arith.index_cast %81 : i32 to index
    %83 = memref.load %arg1[%82] : memref<32xi32, #tpu.memory_space<smem>>
    %84 = arith.index_cast %83 : i32 to index
    %c0_35 = arith.constant 0 : index
    %85 = vector.load %arg3[%84, %c0_35] : memref<64x128xf32, #tpu.memory_space<vmem>>, vector<1x128xf32>
    %c11 = arith.constant 11 : index
    %c0_36 = arith.constant 0 : index
    %86 = vector.load %arg5[%c11, %c0_36] : memref<32x128xf32, #tpu.memory_space<vmem>>, vector<1x128xf32>
    tpu.vector_store %arg5[%c11, %c0_36], %85 {strides = array<i32>} : memref<32x128xf32, #tpu.memory_space<vmem>>, vector<1x128xf32>,
    %c32_i32_37 = arith.constant 32 : i32
    %87 = arith.muli %arg0, %c32_i32_37 : i32
    %c12_i32 = arith.constant 12 : i32
    %88 = arith.addi %87, %c12_i32 : i32
    %89 = arith.index_cast %88 : i32 to index
    %90 = memref.load %arg1[%89] : memref<32xi32, #tpu.memory_space<smem>>
    %91 = arith.index_cast %90 : i32 to index
    %c0_38 = arith.constant 0 : index
    %92 = vector.load %arg3[%91, %c0_38] : memref<64x128xf32, #tpu.memory_space<vmem>>, vector<1x128xf32>
    %c12 = arith.constant 12 : index
    %c0_39 = arith.constant 0 : index
    %93 = vector.load %arg5[%c12, %c0_39] : memref<32x128xf32, #tpu.memory_space<vmem>>, vector<1x128xf32>
    tpu.vector_store %arg5[%c12, %c0_39], %92 {strides = array<i32>} : memref<32x128xf32, #tpu.memory_space<vmem>>, vector<1x128xf32>,
    %c32_i32_40 = arith.constant 32 : i32
    %94 = arith.muli %arg0, %c32_i32_40 : i32
    %c13_i32 = arith.constant 13 : i32
    %95 = arith.addi %94, %c13_i32 : i32
    %96 = arith.index_cast %95 : i32 to index
    %97 = memref.load %arg1[%96] : memref<32xi32, #tpu.memory_space<smem>>
    %98 = arith.index_cast %97 : i32 to index
    %c0_41 = arith.constant 0 : index
    %99 = vector.load %arg3[%98, %c0_41] : memref<64x128xf32, #tpu.memory_space<vmem>>, vector<1x128xf32>
    %c13 = arith.constant 13 : index
    %c0_42 = arith.constant 0 : index
    %100 = vector.load %arg5[%c13, %c0_42] : memref<32x128xf32, #tpu.memory_space<vmem>>, vector<1x128xf32>
    tpu.vector_store %arg5[%c13, %c0_42], %99 {strides = array<i32>} : memref<32x128xf32, #tpu.memory_space<vmem>>, vector<1x128xf32>,
    %c32_i32_43 = arith.constant 32 : i32
    %101 = arith.muli %arg0, %c32_i32_43 : i32
    %c14_i32 = arith.constant 14 : i32
    %102 = arith.addi %101, %c14_i32 : i32
    %103 = arith.index_cast %102 : i32 to index
    %104 = memref.load %arg1[%103] : memref<32xi32, #tpu.memory_space<smem>>
    %105 = arith.index_cast %104 : i32 to index
    %c0_44 = arith.constant 0 : index
    %106 = vector.load %arg3[%105, %c0_44] : memref<64x128xf32, #tpu.memory_space<vmem>>, vector<1x128xf32>
    %c14 = arith.constant 14 : index
    %c0_45 = arith.constant 0 : index
    %107 = vector.load %arg5[%c14, %c0_45] : memref<32x128xf32, #tpu.memory_space<vmem>>, vector<1x128xf32>
    tpu.vector_store %arg5[%c14, %c0_45], %106 {strides = array<i32>} : memref<32x128xf32, #tpu.memory_space<vmem>>, vector<1x128xf32>,
    %c32_i32_46 = arith.constant 32 : i32
    %108 = arith.muli %arg0, %c32_i32_46 : i32
    %c15_i32 = arith.constant 15 : i32
    %109 = arith.addi %108, %c15_i32 : i32
    %110 = arith.index_cast %109 : i32 to index
    %111 = memref.load %arg1[%110] : memref<32xi32, #tpu.memory_space<smem>>
    %112 = arith.index_cast %111 : i32 to index
    %c0_47 = arith.constant 0 : index
    %113 = vector.load %arg3[%112, %c0_47] : memref<64x128xf32, #tpu.memory_space<vmem>>, vector<1x128xf32>
    %c15 = arith.constant 15 : index
    %c0_48 = arith.constant 0 : index
    %114 = vector.load %arg5[%c15, %c0_48] : memref<32x128xf32, #tpu.memory_space<vmem>>, vector<1x128xf32>
    tpu.vector_store %arg5[%c15, %c0_48], %113 {strides = array<i32>} : memref<32x128xf32, #tpu.memory_space<vmem>>, vector<1x128xf32>,
    %c32_i32_49 = arith.constant 32 : i32
    %115 = arith.muli %arg0, %c32_i32_49 : i32
    %c16_i32 = arith.constant 16 : i32
    %116 = arith.addi %115, %c16_i32 : i32
    %117 = arith.index_cast %116 : i32 to index
    %118 = memref.load %arg1[%117] : memref<32xi32, #tpu.memory_space<smem>>
    %119 = arith.index_cast %118 : i32 to index
    %c0_50 = arith.constant 0 : index
    %120 = vector.load %arg3[%119, %c0_50] : memref<64x128xf32, #tpu.memory_space<vmem>>, vector<1x128xf32>
    %c16 = arith.constant 16 : index
    %c0_51 = arith.constant 0 : index
    %121 = vector.load %arg5[%c16, %c0_51] : memref<32x128xf32, #tpu.memory_space<vmem>>, vector<1x128xf32>
    tpu.vector_store %arg5[%c16, %c0_51], %120 {strides = array<i32>} : memref<32x128xf32, #tpu.memory_space<vmem>>, vector<1x128xf32>,
    %c32_i32_52 = arith.constant 32 : i32
    %122 = arith.muli %arg0, %c32_i32_52 : i32
    %c17_i32 = arith.constant 17 : i32
    %123 = arith.addi %122, %c17_i32 : i32
    %124 = arith.index_cast %123 : i32 to index
    %125 = memref.load %arg1[%124] : memref<32xi32, #tpu.memory_space<smem>>
    %126 = arith.index_cast %125 : i32 to index
    %c0_53 = arith.constant 0 : index
    %127 = vector.load %arg3[%126, %c0_53] : memref<64x128xf32, #tpu.memory_space<vmem>>, vector<1x128xf32>
    %c17 = arith.constant 17 : index
    %c0_54 = arith.constant 0 : index
    %128 = vector.load %arg5[%c17, %c0_54] : memref<32x128xf32, #tpu.memory_space<vmem>>, vector<1x128xf32>
    tpu.vector_store %arg5[%c17, %c0_54], %127 {strides = array<i32>} : memref<32x128xf32, #tpu.memory_space<vmem>>, vector<1x128xf32>,
    %c32_i32_55 = arith.constant 32 : i32
    %129 = arith.muli %arg0, %c32_i32_55 : i32
    %c18_i32 = arith.constant 18 : i32
    %130 = arith.addi %129, %c18_i32 : i32
    %131 = arith.index_cast %130 : i32 to index
    %132 = memref.load %arg1[%131] : memref<32xi32, #tpu.memory_space<smem>>
    %133 = arith.index_cast %132 : i32 to index
    %c0_56 = arith.constant 0 : index
    %134 = vector.load %arg3[%133, %c0_56] : memref<64x128xf32, #tpu.memory_space<vmem>>, vector<1x128xf32>
    %c18 = arith.constant 18 : index
    %c0_57 = arith.constant 0 : index
    %135 = vector.load %arg5[%c18, %c0_57] : memref<32x128xf32, #tpu.memory_space<vmem>>, vector<1x128xf32>
    tpu.vector_store %arg5[%c18, %c0_57], %134 {strides = array<i32>} : memref<32x128xf32, #tpu.memory_space<vmem>>, vector<1x128xf32>,
    %c32_i32_58 = arith.constant 32 : i32
    %136 = arith.muli %arg0, %c32_i32_58 : i32
    %c19_i32 = arith.constant 19 : i32
    %137 = arith.addi %136, %c19_i32 : i32
    %138 = arith.index_cast %137 : i32 to index
    %139 = memref.load %arg1[%138] : memref<32xi32, #tpu.memory_space<smem>>
    %140 = arith.index_cast %139 : i32 to index
    %c0_59 = arith.constant 0 : index
    %141 = vector.load %arg3[%140, %c0_59] : memref<64x128xf32, #tpu.memory_space<vmem>>, vector<1x128xf32>
    %c19 = arith.constant 19 : index
    %c0_60 = arith.constant 0 : index
    %142 = vector.load %arg5[%c19, %c0_60] : memref<32x128xf32, #tpu.memory_space<vmem>>, vector<1x128xf32>
    tpu.vector_store %arg5[%c19, %c0_60], %141 {strides = array<i32>} : memref<32x128xf32, #tpu.memory_space<vmem>>, vector<1x128xf32>,
    %c32_i32_61 = arith.constant 32 : i32
    %143 = arith.muli %arg0, %c32_i32_61 : i32
    %c20_i32 = arith.constant 20 : i32
    %144 = arith.addi %143, %c20_i32 : i32
    %145 = arith.index_cast %144 : i32 to index
    %146 = memref.load %arg1[%145] : memref<32xi32, #tpu.memory_space<smem>>
    %147 = arith.index_cast %146 : i32 to index
    %c0_62 = arith.constant 0 : index
    %148 = vector.load %arg3[%147, %c0_62] : memref<64x128xf32, #tpu.memory_space<vmem>>, vector<1x128xf32>
    %c20 = arith.constant 20 : index
    %c0_63 = arith.constant 0 : index
    %149 = vector.load %arg5[%c20, %c0_63] : memref<32x128xf32, #tpu.memory_space<vmem>>, vector<1x128xf32>
    tpu.vector_store %arg5[%c20, %c0_63], %148 {strides = array<i32>} : memref<32x128xf32, #tpu.memory_space<vmem>>, vector<1x128xf32>,
    %c32_i32_64 = arith.constant 32 : i32
    %150 = arith.muli %arg0, %c32_i32_64 : i32
    %c21_i32 = arith.constant 21 : i32
    %151 = arith.addi %150, %c21_i32 : i32
    %152 = arith.index_cast %151 : i32 to index
    %153 = memref.load %arg1[%152] : memref<32xi32, #tpu.memory_space<smem>>
    %154 = arith.index_cast %153 : i32 to index
    %c0_65 = arith.constant 0 : index
    %155 = vector.load %arg3[%154, %c0_65] : memref<64x128xf32, #tpu.memory_space<vmem>>, vector<1x128xf32>
    %c21 = arith.constant 21 : index
    %c0_66 = arith.constant 0 : index
    %156 = vector.load %arg5[%c21, %c0_66] : memref<32x128xf32, #tpu.memory_space<vmem>>, vector<1x128xf32>
    tpu.vector_store %arg5[%c21, %c0_66], %155 {strides = array<i32>} : memref<32x128xf32, #tpu.memory_space<vmem>>, vector<1x128xf32>,
    %c32_i32_67 = arith.constant 32 : i32
    %157 = arith.muli %arg0, %c32_i32_67 : i32
    %c22_i32 = arith.constant 22 : i32
    %158 = arith.addi %157, %c22_i32 : i32
    %159 = arith.index_cast %158 : i32 to index
    %160 = memref.load %arg1[%159] : memref<32xi32, #tpu.memory_space<smem>>
    %161 = arith.index_cast %160 : i32 to index
    %c0_68 = arith.constant 0 : index
    %162 = vector.load %arg3[%161, %c0_68] : memref<64x128xf32, #tpu.memory_space<vmem>>, vector<1x128xf32>
    %c22 = arith.constant 22 : index
    %c0_69 = arith.constant 0 : index
    %163 = vector.load %arg5[%c22, %c0_69] : memref<32x128xf32, #tpu.memory_space<vmem>>, vector<1x128xf32>
    tpu.vector_store %arg5[%c22, %c0_69], %162 {strides = array<i32>} : memref<32x128xf32, #tpu.memory_space<vmem>>, vector<1x128xf32>,
    %c32_i32_70 = arith.constant 32 : i32
    %164 = arith.muli %arg0, %c32_i32_70 : i32
    %c23_i32 = arith.constant 23 : i32
    %165 = arith.addi %164, %c23_i32 : i32
    %166 = arith.index_cast %165 : i32 to index
    %167 = memref.load %arg1[%166] : memref<32xi32, #tpu.memory_space<smem>>
    %168 = arith.index_cast %167 : i32 to index
    %c0_71 = arith.constant 0 : index
    %169 = vector.load %arg3[%168, %c0_71] : memref<64x128xf32, #tpu.memory_space<vmem>>, vector<1x128xf32>
    %c23 = arith.constant 23 : index
    %c0_72 = arith.constant 0 : index
    %170 = vector.load %arg5[%c23, %c0_72] : memref<32x128xf32, #tpu.memory_space<vmem>>, vector<1x128xf32>
    tpu.vector_store %arg5[%c23, %c0_72], %169 {strides = array<i32>} : memref<32x128xf32, #tpu.memory_space<vmem>>, vector<1x128xf32>,
    %c32_i32_73 = arith.constant 32 : i32
    %171 = arith.muli %arg0, %c32_i32_73 : i32
    %c24_i32 = arith.constant 24 : i32
    %172 = arith.addi %171, %c24_i32 : i32
    %173 = arith.index_cast %172 : i32 to index
    %174 = memref.load %arg1[%173] : memref<32xi32, #tpu.memory_space<smem>>
    %175 = arith.index_cast %174 : i32 to index
    %c0_74 = arith.constant 0 : index
    %176 = vector.load %arg3[%175, %c0_74] : memref<64x128xf32, #tpu.memory_space<vmem>>, vector<1x128xf32>
    %c24 = arith.constant 24 : index
    %c0_75 = arith.constant 0 : index
    %177 = vector.load %arg5[%c24, %c0_75] : memref<32x128xf32, #tpu.memory_space<vmem>>, vector<1x128xf32>
    tpu.vector_store %arg5[%c24, %c0_75], %176 {strides = array<i32>} : memref<32x128xf32, #tpu.memory_space<vmem>>, vector<1x128xf32>,
    %c32_i32_76 = arith.constant 32 : i32
    %178 = arith.muli %arg0, %c32_i32_76 : i32
    %c25_i32 = arith.constant 25 : i32
    %179 = arith.addi %178, %c25_i32 : i32
    %180 = arith.index_cast %179 : i32 to index
    %181 = memref.load %arg1[%180] : memref<32xi32, #tpu.memory_space<smem>>
    %182 = arith.index_cast %181 : i32 to index
    %c0_77 = arith.constant 0 : index
    %183 = vector.load %arg3[%182, %c0_77] : memref<64x128xf32, #tpu.memory_space<vmem>>, vector<1x128xf32>
    %c25 = arith.constant 25 : index
    %c0_78 = arith.constant 0 : index
    %184 = vector.load %arg5[%c25, %c0_78] : memref<32x128xf32, #tpu.memory_space<vmem>>, vector<1x128xf32>
    tpu.vector_store %arg5[%c25, %c0_78], %183 {strides = array<i32>} : memref<32x128xf32, #tpu.memory_space<vmem>>, vector<1x128xf32>,
    %c32_i32_79 = arith.constant 32 : i32
    %185 = arith.muli %arg0, %c32_i32_79 : i32
    %c26_i32 = arith.constant 26 : i32
    %186 = arith.addi %185, %c26_i32 : i32
    %187 = arith.index_cast %186 : i32 to index
    %188 = memref.load %arg1[%187] : memref<32xi32, #tpu.memory_space<smem>>
    %189 = arith.index_cast %188 : i32 to index
    %c0_80 = arith.constant 0 : index
    %190 = vector.load %arg3[%189, %c0_80] : memref<64x128xf32, #tpu.memory_space<vmem>>, vector<1x128xf32>
    %c26 = arith.constant 26 : index
    %c0_81 = arith.constant 0 : index
    %191 = vector.load %arg5[%c26, %c0_81] : memref<32x128xf32, #tpu.memory_space<vmem>>, vector<1x128xf32>
    tpu.vector_store %arg5[%c26, %c0_81], %190 {strides = array<i32>} : memref<32x128xf32, #tpu.memory_space<vmem>>, vector<1x128xf32>,
    %c32_i32_82 = arith.constant 32 : i32
    %192 = arith.muli %arg0, %c32_i32_82 : i32
    %c27_i32 = arith.constant 27 : i32
    %193 = arith.addi %192, %c27_i32 : i32
    %194 = arith.index_cast %193 : i32 to index
    %195 = memref.load %arg1[%194] : memref<32xi32, #tpu.memory_space<smem>>
    %196 = arith.index_cast %195 : i32 to index
    %c0_83 = arith.constant 0 : index
    %197 = vector.load %arg3[%196, %c0_83] : memref<64x128xf32, #tpu.memory_space<vmem>>, vector<1x128xf32>
    %c27 = arith.constant 27 : index
    %c0_84 = arith.constant 0 : index
    %198 = vector.load %arg5[%c27, %c0_84] : memref<32x128xf32, #tpu.memory_space<vmem>>, vector<1x128xf32>
    tpu.vector_store %arg5[%c27, %c0_84], %197 {strides = array<i32>} : memref<32x128xf32, #tpu.memory_space<vmem>>, vector<1x128xf32>,
    %c32_i32_85 = arith.constant 32 : i32
    %199 = arith.muli %arg0, %c32_i32_85 : i32
    %c28_i32 = arith.constant 28 : i32
    %200 = arith.addi %199, %c28_i32 : i32
    %201 = arith.index_cast %200 : i32 to index
    %202 = memref.load %arg1[%201] : memref<32xi32, #tpu.memory_space<smem>>
    %203 = arith.index_cast %202 : i32 to index
    %c0_86 = arith.constant 0 : index
    %204 = vector.load %arg3[%203, %c0_86] : memref<64x128xf32, #tpu.memory_space<vmem>>, vector<1x128xf32>
    %c28 = arith.constant 28 : index
    %c0_87 = arith.constant 0 : index
    %205 = vector.load %arg5[%c28, %c0_87] : memref<32x128xf32, #tpu.memory_space<vmem>>, vector<1x128xf32>
    tpu.vector_store %arg5[%c28, %c0_87], %204 {strides = array<i32>} : memref<32x128xf32, #tpu.memory_space<vmem>>, vector<1x128xf32>,
    %c32_i32_88 = arith.constant 32 : i32
    %206 = arith.muli %arg0, %c32_i32_88 : i32
    %c29_i32 = arith.constant 29 : i32
    %207 = arith.addi %206, %c29_i32 : i32
    %208 = arith.index_cast %207 : i32 to index
    %209 = memref.load %arg1[%208] : memref<32xi32, #tpu.memory_space<smem>>
    %210 = arith.index_cast %209 : i32 to index
    %c0_89 = arith.constant 0 : index
    %211 = vector.load %arg3[%210, %c0_89] : memref<64x128xf32, #tpu.memory_space<vmem>>, vector<1x128xf32>
    %c29 = arith.constant 29 : index
    %c0_90 = arith.constant 0 : index
    %212 = vector.load %arg5[%c29, %c0_90] : memref<32x128xf32, #tpu.memory_space<vmem>>, vector<1x128xf32>
    tpu.vector_store %arg5[%c29, %c0_90], %211 {strides = array<i32>} : memref<32x128xf32, #tpu.memory_space<vmem>>, vector<1x128xf32>,
    %c32_i32_91 = arith.constant 32 : i32
    %213 = arith.muli %arg0, %c32_i32_91 : i32
    %c30_i32 = arith.constant 30 : i32
    %214 = arith.addi %213, %c30_i32 : i32
    %215 = arith.index_cast %214 : i32 to index
    %216 = memref.load %arg1[%215] : memref<32xi32, #tpu.memory_space<smem>>
    %217 = arith.index_cast %216 : i32 to index
    %c0_92 = arith.constant 0 : index
    %218 = vector.load %arg3[%217, %c0_92] : memref<64x128xf32, #tpu.memory_space<vmem>>, vector<1x128xf32>
    %c30 = arith.constant 30 : index
    %c0_93 = arith.constant 0 : index
    %219 = vector.load %arg5[%c30, %c0_93] : memref<32x128xf32, #tpu.memory_space<vmem>>, vector<1x128xf32>
    tpu.vector_store %arg5[%c30, %c0_93], %218 {strides = array<i32>} : memref<32x128xf32, #tpu.memory_space<vmem>>, vector<1x128xf32>,
    %c32_i32_94 = arith.constant 32 : i32
    %220 = arith.muli %arg0, %c32_i32_94 : i32
    %c31_i32 = arith.constant 31 : i32
    %221 = arith.addi %220, %c31_i32 : i32
    %222 = arith.index_cast %221 : i32 to index
    %223 = memref.load %arg1[%222] : memref<32xi32, #tpu.memory_space<smem>>
    %224 = arith.index_cast %223 : i32 to index
    %c0_95 = arith.constant 0 : index
    %225 = vector.load %arg3[%224, %c0_95] : memref<64x128xf32, #tpu.memory_space<vmem>>, vector<1x128xf32>
    %c31 = arith.constant 31 : index
    %c0_96 = arith.constant 0 : index
    %226 = vector.load %arg5[%c31, %c0_96] : memref<32x128xf32, #tpu.memory_space<vmem>>, vector<1x128xf32>
    tpu.vector_store %arg5[%c31, %c0_96], %225 {strides = array<i32>} : memref<32x128xf32, #tpu.memory_space<vmem>>, vector<1x128xf32>,
    %c0_97 = arith.constant 0 : index
    %c0_98 = arith.constant 0 : index
    %227 = vector.load %arg2[%c0_97, %c0_98] : memref<32x128xf32, #tpu.memory_space<vmem>>, vector<32x128xf32>
    %c0_99 = arith.constant 0 : index
    %c0_100 = arith.constant 0 : index
    %228 = vector.load %arg5[%c0_99, %c0_100] : memref<32x128xf32, #tpu.memory_space<vmem>>, vector<32x128xf32>
    %229 = arith.subf %227, %228 : vector<32x128xf32>
    %230 = arith.mulf %229, %229 : vector<32x128xf32>
    %cst = arith.constant dense<0.000000e+00> : vector<32xf32>
    %231 = vector.multi_reduction <add>, %230, %cst [1] : vector<32x128xf32> to vector<32xf32>
    %232 = vector.shape_cast %231 : vector<32xf32> to vector<32x1xf32>
    %cst_101 = arith.constant 9.99999996E-13 : f32
    %cst_102 = arith.constant 9.99999995E+11 : f32
    %233 = vector.broadcast %cst_101 : f32 to vector<32x1xf32>
    %234 = arith.maximumf %233, %232 : vector<32x1xf32>
    %235 = vector.broadcast %cst_102 : f32 to vector<32x1xf32>
    %236 = arith.minimumf %235, %234 : vector<32x1xf32>
    %c32_i32_103 = arith.constant 32 : i32
    %237 = arith.muli %arg0, %c32_i32_103 : i32
    %238 = tpu.iota {dimensions = array<i32: 0>} : vector<32x1xi32>
    %239 = vector.broadcast %237 : i32 to vector<32x1xi32>
    %240 = arith.addi %239, %238 : vector<32x1xi32>
    %c32_i32_104 = arith.constant 32 : i32
    %241 = vector.broadcast %c32_i32_104 : i32 to vector<32x1xi32>
    %242 = arith.cmpi slt, %240, %241 : vector<32x1xi32>
    %cst_105 = arith.constant 0.000000e+00 : f32
    %243 = vector.broadcast %cst_105 : f32 to vector<32x1xf32>
    %244 = arith.select %242, %236, %243 : vector<32x1xi1>, vector<32x1xf32>
    %245 = vector.shape_cast %244 : vector<32x1xf32> to vector<1x32x1xf32>
    %cst_106 = arith.constant dense<0.000000e+00> : vector<1xf32>
    %246 = vector.multi_reduction <add>, %245, %cst_106 [1, 2] : vector<1x32x1xf32> to vector<1xf32>
    %247 = vector.shape_cast %246 : vector<1xf32> to vector<1x1x1xf32>
    %248 = vector.extract %247[0, 0, 0] : f32 from vector<1x1x1xf32>
    %c0_107 = arith.constant 0 : index
    %c0_108 = arith.constant 0 : index
    %249 = vector.load %arg6[%c0_107, %c0_108] : memref<1x1xf32, #tpu.memory_space<vmem>>, vector<1x1xf32>
    %250 = vector.broadcast %248 : f32 to vector<1x1xf32>
    %251 = arith.addf %249, %250 : vector<1x1xf32>
    %c0_109 = arith.constant 0 : index
    %c0_110 = arith.constant 0 : index
    %252 = vector.load %arg6[%c0_109, %c0_110] : memref<1x1xf32, #tpu.memory_space<vmem>>, vector<1x1xf32>
    tpu.vector_store %arg6[%c0_109, %c0_110], %251 {strides = array<i32>} : memref<1x1xf32, #tpu.memory_space<vmem>>, vector<1x1xf32>,
    %c0_i32_111 = arith.constant 0 : i32
    %253 = arith.cmpi eq, %arg0, %c0_i32_111 : i32
    %254 = arith.extui %253 : i1 to i32
    %c0_i32_112 = arith.constant 0 : i32
    %255 = arith.cmpi ne, %254, %c0_i32_112 : i32
    scf.if %255 {
      %c0_113 = arith.constant 0 : index
      %c0_114 = arith.constant 0 : index
      %256 = vector.load %arg6[%c0_113, %c0_114] : memref<1x1xf32, #tpu.memory_space<vmem>>, vector<1x1xf32>
      %cst_115 = arith.constant 2.016000e-09 : f32
      %257 = vector.broadcast %cst_115 : f32 to vector<1x1xf32>
      %258 = arith.addf %256, %257 : vector<1x1xf32>
      %cst_116 = arith.constant 3.125000e-02 : f32
      %259 = vector.broadcast %cst_116 : f32 to vector<1x1xf32>
      %260 = arith.mulf %258, %259 : vector<1x1xf32>
      %c0_117 = arith.constant 0 : index
      %c0_118 = arith.constant 0 : index
      %261 = vector.load %arg4[%c0_117, %c0_118] : memref<1x1xf32, #tpu.memory_space<vmem>>, vector<1x1xf32>
      tpu.vector_store %arg4[%c0_117, %c0_118], %260 {strides = array<i32>} : memref<1x1xf32, #tpu.memory_space<vmem>>, vector<1x1xf32>,
    } else {
    }
    return
  }
  func.func @transform_0(%arg0: i32, %arg1: memref<32xi32, #tpu.memory_space<smem>>) -> (i32, i32) {
    %c0_i32 = arith.constant 0 : i32
    %c0_i32_0 = arith.constant 0 : i32
    return %arg0, %c0_i32 : i32, i32
  }
  func.func @transform_1(%arg0: i32, %arg1: memref<32xi32, #tpu.memory_space<smem>>) -> (i32, i32) {
    %c0_i32 = arith.constant 0 : i32
    %c0_i32_0 = arith.constant 0 : i32
    %c0_i32_1 = arith.constant 0 : i32
    return %c0_i32, %c0_i32_0 : i32, i32
  }
  func.func @transform_2(%arg0: i32, %arg1: memref<32xi32, #tpu.memory_space<smem>>) -> (i32, i32) {
    %c0_i32 = arith.constant 0 : i32
    %c0_i32_0 = arith.constant 0 : i32
    %c0_i32_1 = arith.constant 0 : i32
    return %c0_i32, %c0_i32_0 : i32, i32
  }
}

</mosaic_0001>

<llo_original>
// kernel: tpu_custom_call.1
$region0: #{tpu_custom_call.1}
  #allocation0 [shape = 'u32[]', space=smem, size = 0x4, offset = 0x4, fixed_abs, tag = 'smem constant byte address 0x4 - core index']
  #allocation1 [shape = 'u32[144,128]{1,0:T(1,128)}', space=vmem, size = 0x12000, scoped, tag = 'internal scratch']
  #allocation2 [shape = 'f32[32,128]{1,0:T(8,128)}', space=vmem, size = 0x4000, scoped, tag = 'scratch operand']
  #allocation3 [shape = 'f32[1,1]{1,0:T(1,128)}', space=vmem, size = 0x200, scoped, tag = 'scratch operand']
  #allocation4 [shape = 's32[1]{0}', space=sflag, size = 0x4, scoped, tag = 'scoped memory for tpu_custom_call.1']
  #allocation5 [shape = 'u8[512]{0}', space=smem, size = 0x200, scoped, tag = 'prefetched SMEM operand 0']
  %s0 = inlined_call_operand.hbm [shape: s32[32], index: 0, kind: input, shape index: {}]
  %s1 = inlined_call_operand.hbm [shape: f32[32,128], index: 1, kind: input, shape index: {}]
  %s2 = inlined_call_operand.hbm [shape: f32[64,128], index: 2, kind: input, shape index: {}]
  %s3 = inlined_call_operand.hbm [shape: f32[1,1], index: 3, kind: output, shape index: {}]
  %s4 = sld [smem:[#allocation0]]
  $region34: #{tpu_custom_call.1} parent=0
    _
  %s6 = ssub.s32 1, %s4
  %s7 = scalar_select 0, %s6, %s4
  %9 = dma.hbm_to_smem %s0, 16, [#allocation5], [#allocation4]
  %10 = dma.done [#allocation4], 16
  %11 = sfence
  $region1: #{tpu_custom_call.1} parent=0
    #allocation6 [shape = 'u8[16384]{0}', space=vmem, size = 0x4000, scoped, tag = 'input window, operand 1, single buffered']
    #allocation7 [shape = 's32[1]{0}', space=sflag, size = 0x4, scoped, tag = 'scoped memory for tpu_custom_call.1']
    #allocation8 [shape = 's32[1]{0}', space=sflag, size = 0x4, scoped, tag = 'scoped memory for tpu_custom_call.1']
    #allocation9 [shape = 'u8[32768]{0}', space=vmem, size = 0x8000, scoped, tag = 'input window, operand 2, single buffered']
    #allocation10 [shape = 's32[1]{0}', space=sflag, size = 0x4, scoped, tag = 'scoped memory for tpu_custom_call.1']
    #allocation11 [shape = 'u8[512]{0}', space=vmem, size = 0x400, scoped, tag = 'output window, operand 0, single buffered']
    %12 = vsyncpa [#allocation7], 0
    %13 = vsyncpa [#allocation10], 0
    %14 = vsyncpa [#allocation8], 0
    // Predicated region
    $region2: #{tpu_custom_call.1} parent=1 // pred_check
      _
    $region3: #{tpu_custom_call.1} parent=1 // pred_check_branch
      %16 = sbr.rel (0) target = $region5
    $region4: #{tpu_custom_call.1} parent=1 // pred_region
      %s18 = ssub.s32 512, 512
      %19 = vsyncadd [#allocation7], %s18
      %s20 = sshll.u32 [#allocation6], 4
      %s21 = int_to_ptr.vmem [resolvable:$true] %s20
      %26 = dma.hbm_to_vmem [thread:$0]  %s1, 512, %s21, [#allocation7], 128, 128, 8
    $region5: #{tpu_custom_call.1} parent=1 // pred_fallthru
      _
    // Predicated region
    $region6: #{tpu_custom_call.1} parent=1 // pred_check
      _
    $region7: #{tpu_custom_call.1} parent=1 // pred_check_branch
      %28 = sbr.rel (0) target = $region9
    $region8: #{tpu_custom_call.1} parent=1 // pred_region
      %s30 = ssub.s32 1024, 1024
      %31 = vsyncadd [#allocation10], %s30
      %s32 = sshll.u32 [#allocation9], 4
      %s33 = int_to_ptr.vmem [resolvable:$true] %s32
      %38 = dma.hbm_to_vmem [thread:$0]  %s2, 1024, %s33, [#allocation10], 128, 128, 8
    $region9: #{tpu_custom_call.1} parent=1 // pred_fallthru
      _
    // Predicated region
    $region10: #{tpu_custom_call.1} parent=1 // pred_check
      _
    $region11: #{tpu_custom_call.1} parent=1 // pred_check_branch
      %40 = sbr.rel (0) target = $region13
    $region12: #{tpu_custom_call.1} parent=1 // pred_region
      %41 = dma.done [#allocation7], 512
    $region13: #{tpu_custom_call.1} parent=1 // pred_fallthru
      _
    // Predicated region
    $region14: #{tpu_custom_call.1} parent=1 // pred_check
      _
    $region15: #{tpu_custom_call.1} parent=1 // pred_check_branch
      %43 = sbr.rel (0) target = $region17
    $region16: #{tpu_custom_call.1} parent=1 // pred_region
      %44 = dma.done [#allocation10], 1024
    $region17: #{tpu_custom_call.1} parent=1 // pred_fallthru
      _
    %p45 = scmp.eq.s32.totalorder 0, 0
    // Predicated region
    $region18: #{tpu_custom_call.1} parent=1 // pred_check
      %p46 = pneg %p45
    $region19: #{tpu_custom_call.1} parent=1 // pred_check_branch
      %48 = sbr.rel (%p46) target = $region21
    $region20: #{tpu_custom_call.1} parent=1 // pred_region
      %vm49 = vcmask 0
      %50 = vst.msk [vmem:[#allocation3] sm:$0x1] %vm49, 0.0
    $region21: #{tpu_custom_call.1} parent=1 // pred_fallthru
      _
    %s51 = smul.u32 0, 32
    %s52 = sld [smem:[#allocation5 + %s51]]
    %s53 = scalar_lea.vmem [#allocation9], %s52
    %v54 = vld [vmem:[%s53] sm:$0x1]
    %55 = vst [vmem:[#allocation2] sm:$0x1] %v54
    %s56 = sadd.s32 %s51, 1
    %s57 = sld [smem:[#allocation5 + %s56]]
    %s58 = scalar_lea.vmem [#allocation9], %s57
    %v59 = vld [vmem:[%s58] sm:$0x1]
    %60 = vst [vmem:[#allocation2 + $0x1] sm:$0x1] %v59
    %s61 = sadd.s32 %s51, 2
    %s62 = sld [smem:[#allocation5 + %s61]]
    %s63 = scalar_lea.vmem [#allocation9], %s62
    %v64 = vld [vmem:[%s63] sm:$0x1]
    %65 = vst [vmem:[#allocation2 + $0x2] sm:$0x1] %v64
    %s66 = sadd.s32 %s51, 3
    %s67 = sld [smem:[#allocation5 + %s66]]
    %s68 = scalar_lea.vmem [#allocation9], %s67
    %v69 = vld [vmem:[%s68] sm:$0x1]
    %70 = vst [vmem:[#allocation2 + $0x3] sm:$0x1] %v69
    %s71 = sadd.s32 %s51, 4
    %s72 = sld [smem:[#allocation5 + %s71]]
    %s73 = scalar_lea.vmem [#allocation9], %s72
    %v74 = vld [vmem:[%s73] sm:$0x1]
    %75 = vst [vmem:[#allocation2 + $0x4] sm:$0x1] %v74
    %s76 = sadd.s32 %s51, 5
    %s77 = sld [smem:[#allocation5 + %s76]]
    %s78 = scalar_lea.vmem [#allocation9], %s77
    %v79 = vld [vmem:[%s78] sm:$0x1]
    %80 = vst [vmem:[#allocation2 + $0x5] sm:$0x1] %v79
    %s81 = sadd.s32 %s51, 6
    %s82 = sld [smem:[#allocation5 + %s81]]
    %s83 = scalar_lea.vmem [#allocation9], %s82
    %v84 = vld [vmem:[%s83] sm:$0x1]
    %85 = vst [vmem:[#allocation2 + $0x6] sm:$0x1] %v84
    %s86 = sadd.s32 %s51, 7
    %s87 = sld [smem:[#allocation5 + %s86]]
    %s88 = scalar_lea.vmem [#allocation9], %s87
    %v89 = vld [vmem:[%s88] sm:$0x1]
    %90 = vst [vmem:[#allocation2 + $0x7] sm:$0x1] %v89
    %s91 = sadd.s32 %s51, 8
    %s92 = sld [smem:[#allocation5 + %s91]]
    %s93 = scalar_lea.vmem [#allocation9], %s92
    %v94 = vld [vmem:[%s93] sm:$0x1]
    %95 = vst [vmem:[#allocation2 + $0x8] sm:$0x1] %v94
    %s96 = sadd.s32 %s51, 9
    %s97 = sld [smem:[#allocation5 + %s96]]
    %s98 = scalar_lea.vmem [#allocation9], %s97
    %v99 = vld [vmem:[%s98] sm:$0x1]
    %100 = vst [vmem:[#allocation2 + $0x9] sm:$0x1] %v99
    %s101 = sadd.s32 %s51, 10
    %s102 = sld [smem:[#allocation5 + %s101]]
    %s103 = scalar_lea.vmem [#allocation9], %s102
    %v104 = vld [vmem:[%s103] sm:$0x1]
    %105 = vst [vmem:[#allocation2 + $0xa] sm:$0x1] %v104
    %s106 = sadd.s32 %s51, 11
    %s107 = sld [smem:[#allocation5 + %s106]]
    %s108 = scalar_lea.vmem [#allocation9], %s107
    %v109 = vld [vmem:[%s108] sm:$0x1]
    %110 = vst [vmem:[#allocation2 + $0xb] sm:$0x1] %v109
    %s111 = sadd.s32 %s51, 12
    %s112 = sld [smem:[#allocation5 + %s111]]
    %s113 = scalar_lea.vmem [#allocation9], %s112
    %v114 = vld [vmem:[%s113] sm:$0x1]
    %115 = vst [vmem:[#allocation2 + $0xc] sm:$0x1] %v114
    %s116 = sadd.s32 %s51, 13
    %s117 = sld [smem:[#allocation5 + %s116]]
    %s118 = scalar_lea.vmem [#allocation9], %s117
    %v119 = vld [vmem:[%s118] sm:$0x1]
    %120 = vst [vmem:[#allocation2 + $0xd] sm:$0x1] %v119
    %s121 = sadd.s32 %s51, 14
    %s122 = sld [smem:[#allocation5 + %s121]]
    %s123 = scalar_lea.vmem [#allocation9], %s122
    %v124 = vld [vmem:[%s123] sm:$0x1]
    %125 = vst [vmem:[#allocation2 + $0xe] sm:$0x1] %v124
    %s126 = sadd.s32 %s51, 15
    %s127 = sld [smem:[#allocation5 + %s126]]
    %s128 = scalar_lea.vmem [#allocation9], %s127
    %v129 = vld [vmem:[%s128] sm:$0x1]
    %130 = vst [vmem:[#allocation2 + $0xf] sm:$0x1] %v129
    %s131 = sadd.s32 %s51, 16
    %s132 = sld [smem:[#allocation5 + %s131]]
    %s133 = scalar_lea.vmem [#allocation9], %s132
    %v134 = vld [vmem:[%s133] sm:$0x1]
    %135 = vst [vmem:[#allocation2 + $0x10] sm:$0x1] %v134
    %s136 = sadd.s32 %s51, 17
    %s137 = sld [smem:[#allocation5 + %s136]]
    %s138 = scalar_lea.vmem [#allocation9], %s137
    %v139 = vld [vmem:[%s138] sm:$0x1]
    %140 = vst [vmem:[#allocation2 + $0x11] sm:$0x1] %v139
    %s141 = sadd.s32 %s51, 18
    %s142 = sld [smem:[#allocation5 + %s141]]
    %s143 = scalar_lea.vmem [#allocation9], %s142
    %v144 = vld [vmem:[%s143] sm:$0x1]
    %145 = vst [vmem:[#allocation2 + $0x12] sm:$0x1] %v144
    %s146 = sadd.s32 %s51, 19
    %s147 = sld [smem:[#allocation5 + %s146]]
    %s148 = scalar_lea.vmem [#allocation9], %s147
    %v149 = vld [vmem:[%s148] sm:$0x1]
    %150 = vst [vmem:[#allocation2 + $0x13] sm:$0x1] %v149
    %s151 = sadd.s32 %s51, 20
    %s152 = sld [smem:[#allocation5 + %s151]]
    %s153 = scalar_lea.vmem [#allocation9], %s152
    %v154 = vld [vmem:[%s153] sm:$0x1]
    %155 = vst [vmem:[#allocation2 + $0x14] sm:$0x1] %v154
    %s156 = sadd.s32 %s51, 21
    %s157 = sld [smem:[#allocation5 + %s156]]
    %s158 = scalar_lea.vmem [#allocation9], %s157
    %v159 = vld [vmem:[%s158] sm:$0x1]
    %160 = vst [vmem:[#allocation2 + $0x15] sm:$0x1] %v159
    %s161 = sadd.s32 %s51, 22
    %s162 = sld [smem:[#allocation5 + %s161]]
    %s163 = scalar_lea.vmem [#allocation9], %s162
    %v164 = vld [vmem:[%s163] sm:$0x1]
    %165 = vst [vmem:[#allocation2 + $0x16] sm:$0x1] %v164
    %s166 = sadd.s32 %s51, 23
    %s167 = sld [smem:[#allocation5 + %s166]]
    %s168 = scalar_lea.vmem [#allocation9], %s167
    %v169 = vld [vmem:[%s168] sm:$0x1]
    %170 = vst [vmem:[#allocation2 + $0x17] sm:$0x1] %v169
    %s171 = sadd.s32 %s51, 24
    %s172 = sld [smem:[#allocation5 + %s171]]
    %s173 = scalar_lea.vmem [#allocation9], %s172
    %v174 = vld [vmem:[%s173] sm:$0x1]
    %175 = vst [vmem:[#allocation2 + $0x18] sm:$0x1] %v174
    %s176 = sadd.s32 %s51, 25
    %s177 = sld [smem:[#allocation5 + %s176]]
    %s178 = scalar_lea.vmem [#allocation9], %s177
    %v179 = vld [vmem:[%s178] sm:$0x1]
    %180 = vst [vmem:[#allocation2 + $0x19] sm:$0x1] %v179
    %s181 = sadd.s32 %s51, 26
    %s182 = sld [smem:[#allocation5 + %s181]]
    %s183 = scalar_lea.vmem [#allocation9], %s182
    %v184 = vld [vmem:[%s183] sm:$0x1]
    %185 = vst [vmem:[#allocation2 + $0x1a] sm:$0x1] %v184
    %s186 = sadd.s32 %s51, 27
    %s187 = sld [smem:[#allocation5 + %s186]]
    %s188 = scalar_lea.vmem [#allocation9], %s187
    %v189 = vld [vmem:[%s188] sm:$0x1]
    %190 = vst [vmem:[#allocation2 + $0x1b] sm:$0x1] %v189
    %s191 = sadd.s32 %s51, 28
    %s192 = sld [smem:[#allocation5 + %s191]]
    %s193 = scalar_lea.vmem [#allocation9], %s192
    %v194 = vld [vmem:[%s193] sm:$0x1]
    %195 = vst [vmem:[#allocation2 + $0x1c] sm:$0x1] %v194
    %s196 = sadd.s32 %s51, 29
    %s197 = sld [smem:[#allocation5 + %s196]]
    %s198 = scalar_lea.vmem [#allocation9], %s197
    %v199 = vld [vmem:[%s198] sm:$0x1]
    %200 = vst [vmem:[#allocation2 + $0x1d] sm:$0x1] %v199
    %s201 = sadd.s32 %s51, 30
    %s202 = sld [smem:[#allocation5 + %s201]]
    %s203 = scalar_lea.vmem [#allocation9], %s202
    %v204 = vld [vmem:[%s203] sm:$0x1]
    %205 = vst [vmem:[#allocation2 + $0x1e] sm:$0x1] %v204
    %s206 = sadd.s32 %s51, 31
    %s207 = sld [smem:[#allocation5 + %s206]]
    %s208 = scalar_lea.vmem [#allocation9], %s207
    %v209 = vld [vmem:[%s208] sm:$0x1]
    %210 = vst [vmem:[#allocation2 + $0x1f] sm:$0x1] %v209
    %v211 = vld [vmem:[#allocation6] sm:$0xff]
    %v212 = vld [vmem:[#allocation6 + $0x8] sm:$0xff]
    %v213 = vld [vmem:[#allocation6 + $0x10] sm:$0xff]
    %v214 = vld [vmem:[#allocation6 + $0x18] sm:$0xff]
    %v215 = vld [vmem:[#allocation2] sm:$0xff]
    %v216 = vld [vmem:[#allocation2 + $0x8] sm:$0xff]
    %v217 = vld [vmem:[#allocation2 + $0x10] sm:$0xff]
    %v218 = vld [vmem:[#allocation2 + $0x18] sm:$0xff]
    %v219 = vsub.f32 %v211, %v215
    %v220 = vsub.f32 %v212, %v216
    %v221 = vsub.f32 %v213, %v217
    %v222 = vsub.f32 %v214, %v218
    %v223 = vmul.f32 %v219, %v219
    %v224 = vmul.f32 %v220, %v220
    %v225 = vmul.f32 %v221, %v221
    %v226 = vmul.f32 %v222, %v222
    %227 = vadd.xlane.f32.xlu0 %v223
    %v228 = vpop.xlane.xlu0 %227
    %229 = vadd.xlane.f32.xlu0 %v224
    %v230 = vpop.xlane.xlu0 %229
    %231 = vadd.xlane.f32.xlu0 %v225
    %v232 = vpop.xlane.xlu0 %231
    %233 = vadd.xlane.f32.xlu0 %v226
    %v234 = vpop.xlane.xlu0 %233
    %v235 = vmax.f32 %v228, 1e-12
    %v236 = vmax.f32 %v230, 1e-12
    %v237 = vmax.f32 %v232, 1e-12
    %v238 = vmax.f32 %v234, 1e-12
    %v239 = vmin.f32 %v235, 1e+12
    %v240 = vmin.f32 %v236, 1e+12
    %v241 = vmin.f32 %v237, 1e+12
    %v242 = vmin.f32 %v238, 1e+12
    %v243 = vlaneseq
    %v244 = vshrl.u32 %v243, 7
    %v245 = vadd.s32 %v244, 8
    %v246 = vadd.s32 %v244, 16
    %v247 = vadd.s32 %v244, 24
    %v248 = vstv %s51
    %v249 = vadd.s32 %v248, %v244
    %v250 = vadd.s32 %v248, %v245
    %v251 = vadd.s32 %v248, %v246
    %v252 = vadd.s32 %v248, %v247
    %vm253 = vcmp.lt.s32.totalorder %v249, 32
    %vm254 = vcmp.lt.s32.totalorder %v250, 32
    %vm255 = vcmp.lt.s32.totalorder %v251, 32
    %vm256 = vcmp.lt.s32.totalorder %v252, 32
    %v257 = vsel %vm253, %v239, 0.0
    %v258 = vsel %vm254, %v240, 0.0
    %v259 = vsel %vm255, %v241, 0.0
    %v260 = vsel %vm256, %v242, 0.0
    %vm261 = vcmask 7168
    %v262 = vsel %vm261, %v257, 0.0
    %v263 = vsel %vm261, %v258, 0.0
    %v264 = vadd.f32 %v262, %v263
    %v265 = vsel %vm261, %v259, 0.0
    %v266 = vadd.f32 %v264, %v265
    %v267 = vsel %vm261, %v260, 0.0
    %v268 = vadd.f32 %v266, %v267
    %269 = vadd.xlane.f32.xlu0 %v268
    %v270 = vpop.xlane.xlu0 %269
    %v271 = vrot.slane %v270, 4
    %v272 = vadd.f32 %v270, %v271
    %v273 = vrot.slane %v272, 2
    %v274 = vadd.f32 %v272, %v273
    %v275 = vrot.slane %v274, 1
    %v276 = vadd.f32 %v274, %v275
    %s277 = vtos %v276
    %v278 = vld [vmem:[#allocation3] sm:$0x1]
    %v279 = vstv %s277
    %v280 = vadd.f32 %v278, %v279
    %vm281 = vcmask 0
    %282 = vst.msk [vmem:[#allocation3] sm:$0x1] %vm281, %v280
    // Predicated region
    $region22: #{tpu_custom_call.1} parent=1 // pred_check
      %p283 = pneg %p45
    $region23: #{tpu_custom_call.1} parent=1 // pred_check_branch
      %285 = sbr.rel (%p283) target = $region25
    $region24: #{tpu_custom_call.1} parent=1 // pred_region
      %v286 = vld [vmem:[#allocation3] sm:$0x1]
      %v287 = vadd.f32 %v286, 2.016e-09
      %v288 = vmul.f32 %v287, 0.03125
      %289 = vst.msk [vmem:[#allocation11] sm:$0x1] %vm281, %v288
    $region25: #{tpu_custom_call.1} parent=1 // pred_fallthru
      _
    // Predicated region
    $region26: #{tpu_custom_call.1} parent=1 // pred_check
      _
    $region27: #{tpu_custom_call.1} parent=1 // pred_check_branch
      %291 = sbr.rel (0) target = $region29
    $region28: #{tpu_custom_call.1} parent=1 // pred_region
      %s293 = ssub.s32 16, 16
      %294 = vsyncadd [#allocation8], %s293
      %s296 = sshll.u32 [#allocation11], 4
      %s297 = int_to_ptr.vmem [resolvable:$true] %s296
      %299 = dma.vmem_to_hbm [thread:$0]  %s297, 16, %s3, [#allocation8]
    $region29: #{tpu_custom_call.1} parent=1 // pred_fallthru
      _
    // Predicated region
    $region30: #{tpu_custom_call.1} parent=1 // pred_check
      _
    $region31: #{tpu_custom_call.1} parent=1 // pred_check_branch
      %301 = sbr.rel (0) target = $region33
    $region32: #{tpu_custom_call.1} parent=1 // pred_region
      %302 = dma.done [#allocation8], 16
    $region33: #{tpu_custom_call.1} parent=1 // pred_fallthru
      _
    %303 = vsyncpa [#allocation7], 1
    %304 = vsyncpa [#allocation10], 1
    %305 = vsyncpa [#allocation8], 1

</llo_original>
